<compile_context>
chip_gen: v6e
topology: v6e:2x2x1
jax: 0.10.0
libtpu: 0.0.40
codegen_flags: <defaults>
</compile_context>

<pallas_src>
import functools

import jax
import jax.numpy as jnp
from jax.experimental import pallas as pl
from jax.experimental.pallas import tpu as pltpu

INPUT_DIM = 2
HIDDEN_DIM = 32
NUM_LAYERS = 3   # number of hidden Linear layers, as in the PyTorch module


def mlp_kernel(x_ref, w_ref, b_ref, o_ref, *, mxu_dtype):
    """Refs (per grid step):
       x_ref: (INPUT_DIM, TB)  feature-major batch tile
       w_ref: (L, H, H)        padded weight slab, PyTorch (out, in) layout
       b_ref: (L, H, 1)        padded bias slab (sublane-major -> lane broadcast)
       o_ref: (1, TB)          lane-dense output tile
    """
    n_linear = w_ref.shape[0]
    x = x_ref[...]                                   # (2, TB) f32

    # Layer 0: K=2 contraction -> two broadcast FMAs on the VPU (a K=2 MXU
    # pass would use ~1.5% of the contraction depth and still pay push/pop).
    # TODO(synk): if a bundle dump shows VALU as the binding slot at large TB,
    # switch this back to jnp.dot(w0[:, :2], x) on the MXU (it has slack here).
    w0 = w_ref[0]                                    # (32, 32); cols 0,1 real
    h = w0[:, 0:1] * x[0:1, :] + w0[:, 1:2] * x[1:2, :] + b_ref[0]
    h = jnp.maximum(h, 0.0)                          # (32, TB) f32

    # Hidden layers: 32x32 matmuls on the MXU, batch on the lane axis.
    # Operands optionally bf16 (v6e/v7x), accumulation always f32.
    for l in range(1, n_linear - 1):                 # static unroll (2 iters)
        w = w_ref[l].astype(mxu_dtype)
        h = jnp.dot(w, h.astype(mxu_dtype),
                    preferred_element_type=jnp.float32) + b_ref[l]
        h = jnp.maximum(h, 0.0)

    # Output layer: (1, 32) @ (32, TB) -> (1, TB); the store is lane-dense.
    w_out = w_ref[n_linear - 1][0:1, :].astype(mxu_dtype)   # (1, 32)
    b_out = b_ref[n_linear - 1][0:1, :]                      # (1, 1)
    out = jnp.dot(w_out, h.astype(mxu_dtype),
                  preferred_element_type=jnp.float32) + b_out
    o_ref[...] = out.astype(o_ref.dtype)


def pack_params(params, hidden_dim=HIDDEN_DIM):
    """Pack PyTorch-layout (out,in)/(out,) params into zero-padded slabs."""
    n = len(params)
    wpack = jnp.zeros((n, hidden_dim, hidden_dim), jnp.float32)
    bpack = jnp.zeros((n, hidden_dim, 1), jnp.float32)
    for l, (w, b) in enumerate(params):
        wpack = wpack.at[l, : w.shape[0], : w.shape[1]].set(w)
        bpack = bpack.at[l, : b.shape[0], 0].set(b)
    return wpack, bpack


def _choose_tiling(batch, *, max_tb=8192):
    """Pick (tile, padded_batch): 128-row granule (fills v5e's MXU M without
    over-padding tiny batches), tiles capped at 8192 rows so compute/DMA dwarf
    the ~0.35 us per-grid-step overhead, and >=2 tiles whenever the batch is
    big enough so the 'parallel' axis can shard across v7x's two TensorCores."""
    b128 = 128 * pl.cdiv(batch, 128)
    if b128 <= 256:
        return b128, b128            # splitting a tiny batch is pure overhead
    n_tiles = max(2, pl.cdiv(b128, max_tb))
    tb = 128 * pl.cdiv(pl.cdiv(b128, n_tiles), 128)
    b_pad = tb * pl.cdiv(b128, tb)
    return tb, b_pad


def policy_network_forward(x, params, *, tb=None, mxu_dtype=jnp.float32):
    """x: (batch, INPUT_DIM) float32.
       params: list of (W, b) with W=(out_features, in_features), b=(out_features,)
       (PyTorch nn.Linear layout).  Set mxu_dtype=jnp.bfloat16 on v6e/v7x for a
       faster matmul path (loosen comparison tolerance accordingly)."""
    batch = x.shape[0]
    n_linear = len(params)

    if tb is None:
        tb, b_pad = _choose_tiling(batch)
    else:
        b_pad = tb * pl.cdiv(batch, tb)

    # Layout plumbing stays in the wrapper, kept minimal: one transpose of the
    # tiny (batch, 2) input, lane-pad only if the batch isn't already aligned.
    x_t = x.T                                            # (2, batch)
    if b_pad != batch:
        x_t = jnp.pad(x_t, ((0, 0), (0, b_pad - batch)))  # (2, b_pad)
    wpack, bpack = pack_params(params)

    # Advisory cost so XLA schedules the surrounding (cheap) layout ops sanely.
    flops = b_pad * (2 * INPUT_DIM * HIDDEN_DIM
                     + 2 * (n_linear - 2) * HIDDEN_DIM * HIDDEN_DIM
                     + 2 * HIDDEN_DIM)
    bytes_accessed = (12 * b_pad
                      + wpack.size * 4 + bpack.size * 4)
    cost = pl.CostEstimate(flops=int(flops), transcendentals=0,
                           bytes_accessed=int(bytes_accessed))

    grid = (b_pad // tb,)
    out_t = pl.pallas_call(
        functools.partial(mlp_kernel, mxu_dtype=mxu_dtype),
        out_shape=jax.ShapeDtypeStruct((1, b_pad), jnp.float32),
        grid=grid,
        in_specs=[
            # batch tile of x, pipelined over the grid
            pl.BlockSpec((INPUT_DIM, tb), lambda i: (0, i)),
            # weight/bias slabs: constant index_map -> resident across tiles
            # (no re-DMA between consecutive steps with an unchanged block idx)
            pl.BlockSpec((n_linear, HIDDEN_DIM, HIDDEN_DIM), lambda i: (0, 0, 0)),
            pl.BlockSpec((n_linear, HIDDEN_DIM, 1), lambda i: (0, 0, 0)),
        ],
        out_specs=pl.BlockSpec((1, tb), lambda i: (0, i)),
        compiler_params=pltpu.CompilerParams(
            # batch tiles are independent -> shard across both TCs on v7x
            dimension_semantics=("parallel",),
        ),
        cost_estimate=cost,
    )(x_t, wpack, bpack)

    # (1, b_pad) -> (batch, 1): contiguous slice + reshape, no transpose pass.
    return out_t[0, :batch].reshape(batch, 1)


def init_params(key, input_dim=INPUT_DIM, hidden_dim=HIDDEN_DIM,
                num_layers=NUM_LAYERS):
    """PyTorch nn.Linear default init: U(-1/sqrt(fan_in), 1/sqrt(fan_in)),
    weights stored (out_features, in_features), biases (out_features,)."""
    dims = [input_dim] + [hidden_dim] * num_layers + [1]
    params = []
    for i in range(len(dims) - 1):
        fan_in, fan_out = dims[i], dims[i + 1]
        key, kw, kb = jax.random.split(key, 3)
        bound = 1.0 / jnp.sqrt(float(fan_in))
        w = jax.random.uniform(kw, (fan_out, fan_in), jnp.float32, -bound, bound)
        b = jax.random.uniform(kb, (fan_out,), jnp.float32, -bound, bound)
        params.append((w, b))
    return params


def reference_forward(x, params):
    """Pure-JAX reference, mathematically identical to the PyTorch module
    (h @ W.T + b with ReLU between layers). Layer 0 is expanded to the same
    two-FMA form as the kernel so the comparison does not depend on the TPU's
    f32 matmul precision mode for the K=2 contraction."""
    w0, b0 = params[0]
    h = x[:, 0:1] * w0[:, 0][None, :] + x[:, 1:2] * w0[:, 1][None, :] + b0[None, :]
    h = jnp.maximum(h, 0.0)
    rest = params[1:]
    for i, (w, b) in enumerate(rest):
        h = h @ w.T + b[None, :]
        if i < len(rest) - 1:
            h = jnp.maximum(h, 0.0)
    return h


if __name__ == "__main__":
    key = jax.random.PRNGKey(0)
    key, kx1, kx2 = jax.random.split(key, 3)
    params = init_params(key)

    # Small primary test: single-tile path.
    batch = 8
    x = jax.random.normal(kx1, (batch, INPUT_DIM), dtype=jnp.float32)
    out = jax.block_until_ready(policy_network_forward(x, params))
    ref = reference_forward(x, params)
    assert out.shape == (batch, 1), out.shape
    assert jnp.allclose(out, ref, atol=1e-4, rtol=1e-4), (out, ref)

    # Secondary test: exercises the multi-tile (grid>1) + padding path.
    batch2 = 300
    x2 = jax.random.normal(kx2, (batch2, INPUT_DIM), dtype=jnp.float32)
    out2 = jax.block_until_ready(policy_network_forward(x2, params))
    ref2 = reference_forward(x2, params)
    assert out2.shape == (batch2, 1), out2.shape
    assert jnp.allclose(out2, ref2, atol=1e-4, rtol=1e-4)

    print("KERNEL_OK")
</pallas_src>

<mosaic_0001>
module attributes {stable_mosaic.version = 11 : i64} {
  func.func @mlp_kernel(%arg0: i32, %arg1: memref<2x128xf32, #tpu.memory_space<vmem>>, %arg2: memref<4x32x32xf32, #tpu.memory_space<vmem>>, %arg3: memref<4x32x1xf32, #tpu.memory_space<vmem>>, %arg4: memref<1x128xf32, #tpu.memory_space<vmem>>) attributes {dimension_semantics = [#tpu.dimension_semantics<parallel>], iteration_bounds = array<i64: 1>, scalar_prefetch = 0 : i64, scratch_operands = 0 : i64, tpu.core_type = #tpu.core_type<tc>, window_params = [{transform_indices = @transform_0, window_bounds = array<i64: 2, 128>}, {pipeline_mode = #tpu.pipeline_mode<synchronous>, transform_indices = @transform_1, window_bounds = array<i64: 4, 32, 32>}, {pipeline_mode = #tpu.pipeline_mode<synchronous>, transform_indices = @transform_2, window_bounds = array<i64: 4, 32, 1>}, {transform_indices = @transform_3, window_bounds = array<i64: 1, 128>}]} {
    %c0 = arith.constant 0 : index
    %c0_0 = arith.constant 0 : index
    %0 = vector.load %arg1[%c0, %c0_0] : memref<2x128xf32, #tpu.memory_space<vmem>>, vector<2x128xf32>
    %c0_1 = arith.constant 0 : index
    %c0_2 = arith.constant 0 : index
    %c0_3 = arith.constant 0 : index
    %1 = vector.load %arg2[%c0_1, %c0_2, %c0_3] : memref<4x32x32xf32, #tpu.memory_space<vmem>>, vector<1x32x32xf32>
    %2 = vector.shape_cast %1 : vector<1x32x32xf32> to vector<32x32xf32>
    %3 = vector.extract_strided_slice %2 {offsets = [0, 0], sizes = [32, 1], strides = [1, 1]} : vector<32x32xf32> to vector<32x1xf32>
    %4 = vector.extract_strided_slice %0 {offsets = [0, 0], sizes = [1, 128], strides = [1, 1]} : vector<2x128xf32> to vector<1x128xf32>
    %5 = vector.broadcast %3 : vector<32x1xf32> to vector<32x128xf32>
    %6 = vector.broadcast %4 : vector<1x128xf32> to vector<32x128xf32>
    %7 = arith.mulf %5, %6 : vector<32x128xf32>
    %8 = vector.extract_strided_slice %2 {offsets = [0, 1], sizes = [32, 1], strides = [1, 1]} : vector<32x32xf32> to vector<32x1xf32>
    %9 = vector.extract_strided_slice %0 {offsets = [1, 0], sizes = [1, 128], strides = [1, 1]} : vector<2x128xf32> to vector<1x128xf32>
    %10 = vector.broadcast %8 : vector<32x1xf32> to vector<32x128xf32>
    %11 = vector.broadcast %9 : vector<1x128xf32> to vector<32x128xf32>
    %12 = arith.mulf %10, %11 : vector<32x128xf32>
    %13 = arith.addf %7, %12 : vector<32x128xf32>
    %c0_4 = arith.constant 0 : index
    %c0_5 = arith.constant 0 : index
    %c0_6 = arith.constant 0 : index
    %14 = vector.load %arg3[%c0_4, %c0_5, %c0_6] : memref<4x32x1xf32, #tpu.memory_space<vmem>>, vector<1x32x1xf32>
    %15 = vector.shape_cast %14 : vector<1x32x1xf32> to vector<32x1xf32>
    %16 = vector.broadcast %15 : vector<32x1xf32> to vector<32x128xf32>
    %17 = arith.addf %13, %16 : vector<32x128xf32>
    %cst = arith.constant 0.000000e+00 : f32
    %18 = vector.broadcast %cst : f32 to vector<32x128xf32>
    %19 = arith.maximumf %17, %18 : vector<32x128xf32>
    %c1 = arith.constant 1 : index
    %c0_7 = arith.constant 0 : index
    %c0_8 = arith.constant 0 : index
    %20 = vector.load %arg2[%c1, %c0_7, %c0_8] : memref<4x32x32xf32, #tpu.memory_space<vmem>>, vector<1x32x32xf32>
    %21 = vector.shape_cast %20 : vector<1x32x32xf32> to vector<32x32xf32>
    %cst_9 = arith.constant dense<0.000000e+00> : vector<32x128xf32>
    %22 = tpu.matmul %21, %19, %cst_9 {dimension_numbers = #tpu.dot_dimension_numbers<[1], [0], [0], [1], [0, 0, 1, 1], [], []>} : vector<32x32xf32>, vector<32x128xf32>, vector<32x128xf32> -> vector<32x128xf32>
    %c1_10 = arith.constant 1 : index
    %c0_11 = arith.constant 0 : index
    %c0_12 = arith.constant 0 : index
    %23 = vector.load %arg3[%c1_10, %c0_11, %c0_12] : memref<4x32x1xf32, #tpu.memory_space<vmem>>, vector<1x32x1xf32>
    %24 = vector.shape_cast %23 : vector<1x32x1xf32> to vector<32x1xf32>
    %25 = vector.broadcast %24 : vector<32x1xf32> to vector<32x128xf32>
    %26 = arith.addf %22, %25 : vector<32x128xf32>
    %cst_13 = arith.constant 0.000000e+00 : f32
    %27 = vector.broadcast %cst_13 : f32 to vector<32x128xf32>
    %28 = arith.maximumf %26, %27 : vector<32x128xf32>
    %c2 = arith.constant 2 : index
    %c0_14 = arith.constant 0 : index
    %c0_15 = arith.constant 0 : index
    %29 = vector.load %arg2[%c2, %c0_14, %c0_15] : memref<4x32x32xf32, #tpu.memory_space<vmem>>, vector<1x32x32xf32>
    %30 = vector.shape_cast %29 : vector<1x32x32xf32> to vector<32x32xf32>
    %cst_16 = arith.constant dense<0.000000e+00> : vector<32x128xf32>
    %31 = tpu.matmul %30, %28, %cst_16 {dimension_numbers = #tpu.dot_dimension_numbers<[1], [0], [0], [1], [0, 0, 1, 1], [], []>} : vector<32x32xf32>, vector<32x128xf32>, vector<32x128xf32> -> vector<32x128xf32>
    %c2_17 = arith.constant 2 : index
    %c0_18 = arith.constant 0 : index
    %c0_19 = arith.constant 0 : index
    %32 = vector.load %arg3[%c2_17, %c0_18, %c0_19] : memref<4x32x1xf32, #tpu.memory_space<vmem>>, vector<1x32x1xf32>
    %33 = vector.shape_cast %32 : vector<1x32x1xf32> to vector<32x1xf32>
    %34 = vector.broadcast %33 : vector<32x1xf32> to vector<32x128xf32>
    %35 = arith.addf %31, %34 : vector<32x128xf32>
    %cst_20 = arith.constant 0.000000e+00 : f32
    %36 = vector.broadcast %cst_20 : f32 to vector<32x128xf32>
    %37 = arith.maximumf %35, %36 : vector<32x128xf32>
    %c3 = arith.constant 3 : index
    %c0_21 = arith.constant 0 : index
    %c0_22 = arith.constant 0 : index
    %38 = vector.load %arg2[%c3, %c0_21, %c0_22] : memref<4x32x32xf32, #tpu.memory_space<vmem>>, vector<1x32x32xf32>
    %39 = vector.shape_cast %38 : vector<1x32x32xf32> to vector<32x32xf32>
    %40 = vector.extract_strided_slice %39 {offsets = [0, 0], sizes = [1, 32], strides = [1, 1]} : vector<32x32xf32> to vector<1x32xf32>
    %c3_23 = arith.constant 3 : index
    %c0_24 = arith.constant 0 : index
    %c0_25 = arith.constant 0 : index
    %41 = vector.load %arg3[%c3_23, %c0_24, %c0_25] : memref<4x32x1xf32, #tpu.memory_space<vmem>>, vector<1x32x1xf32>
    %42 = vector.shape_cast %41 : vector<1x32x1xf32> to vector<32x1xf32>
    %43 = vector.extract_strided_slice %42 {offsets = [0, 0], sizes = [1, 1], strides = [1, 1]} : vector<32x1xf32> to vector<1x1xf32>
    %cst_26 = arith.constant dense<0.000000e+00> : vector<1x128xf32>
    %44 = tpu.matmul %40, %37, %cst_26 {dimension_numbers = #tpu.dot_dimension_numbers<[1], [0], [0], [1], [0, 0, 1, 1], [], []>} : vector<1x32xf32>, vector<32x128xf32>, vector<1x128xf32> -> vector<1x128xf32>
    %45 = vector.broadcast %43 : vector<1x1xf32> to vector<1x128xf32>
    %46 = arith.addf %44, %45 : vector<1x128xf32>
    %c0_27 = arith.constant 0 : index
    %c0_28 = arith.constant 0 : index
    %47 = vector.load %arg4[%c0_27, %c0_28] : memref<1x128xf32, #tpu.memory_space<vmem>>, vector<1x128xf32>
    tpu.vector_store %arg4[%c0_27, %c0_28], %46 {strides = array<i32>} : memref<1x128xf32, #tpu.memory_space<vmem>>, vector<1x128xf32>,
    return
  }
  func.func @transform_0(%arg0: i32) -> (i32, i32) {
    %c0_i32 = arith.constant 0 : i32
    %c0_i32_0 = arith.constant 0 : i32
    return %c0_i32, %arg0 : i32, i32
  }
  func.func @transform_1(%arg0: i32) -> (i32, i32, i32) {
    %c0_i32 = arith.constant 0 : i32
    %c0_i32_0 = arith.constant 0 : i32
    %c0_i32_1 = arith.constant 0 : i32
    %c0_i32_2 = arith.constant 0 : i32
    return %c0_i32, %c0_i32_0, %c0_i32_1 : i32, i32, i32
  }
  func.func @transform_2(%arg0: i32) -> (i32, i32, i32) {
    %c0_i32 = arith.constant 0 : i32
    %c0_i32_0 = arith.constant 0 : i32
    %c0_i32_1 = arith.constant 0 : i32
    %c0_i32_2 = arith.constant 0 : i32
    return %c0_i32, %c0_i32_0, %c0_i32_1 : i32, i32, i32
  }
  func.func @transform_3(%arg0: i32) -> (i32, i32) {
    %c0_i32 = arith.constant 0 : i32
    %c0_i32_0 = arith.constant 0 : i32
    return %c0_i32, %arg0 : i32, i32
  }
}

</mosaic_0001>

<llo_original>
// kernel: tpu_custom_call.1
$region0: #{tpu_custom_call.1}
  #allocation0 [shape = 'u32[]', space=smem, size = 0x4, offset = 0x4, fixed_abs, tag = 'smem constant byte address 0x4 - core index']
  #allocation1 [shape = 'u32[144,128]{1,0:T(1,128)}', space=vmem, size = 0x12000, scoped, tag = 'internal scratch']
  %s0 = inlined_call_operand.vmem [shape: f32[2,128], index: 0, kind: input, shape index: {}]
  %s1 = inlined_call_operand.vmem [shape: f32[4,32,32], index: 1, kind: input, shape index: {}]
  %s2 = inlined_call_operand.vmem [shape: f32[4,32,1], index: 2, kind: input, shape index: {}]
  %s3 = inlined_call_operand.hbm [shape: f32[1,128], index: 3, kind: output, shape index: {}]
  %s4 = sld [smem:[#allocation0]]
  $region22: #{tpu_custom_call.1} parent=0
    _
  %s6 = ssub.s32 1, %s4
  %s7 = scalar_select 0, %s6, %s4
  $region1: #{tpu_custom_call.1} parent=0
    #allocation2 [shape = 'u8[512]{0}', space=vmem, size = 0x400, scoped, tag = 'output window, operand 0, single buffered']
    #allocation3 [shape = 's32[1]{0}', space=sflag, size = 0x4, scoped, tag = 'scoped memory for tpu_custom_call.1']
    %8 = vsyncpa [#allocation3], 0
    // Predicated region
    $region2: #{tpu_custom_call.1} parent=1 // pred_check
      _
    $region3: #{tpu_custom_call.1} parent=1 // pred_check_branch
      %10 = sbr.rel (0) target = $region5
    $region4: #{tpu_custom_call.1} parent=1 // pred_region
      _
    $region5: #{tpu_custom_call.1} parent=1 // pred_fallthru
      _
    // Predicated region
    $region6: #{tpu_custom_call.1} parent=1 // pred_check
      _
    $region7: #{tpu_custom_call.1} parent=1 // pred_check_branch
      %12 = sbr.rel (0) target = $region9
    $region8: #{tpu_custom_call.1} parent=1 // pred_region
      _
    $region9: #{tpu_custom_call.1} parent=1 // pred_fallthru
      _
    // Predicated region
    $region10: #{tpu_custom_call.1} parent=1 // pred_check
      _
    $region11: #{tpu_custom_call.1} parent=1 // pred_check_branch
      %14 = sbr.rel (0) target = $region13
    $region12: #{tpu_custom_call.1} parent=1 // pred_region
      _
    $region13: #{tpu_custom_call.1} parent=1 // pred_fallthru
      _
    %v15 = vld [vmem:[%s0] sm:$0x3]
    %v16 = vld [vmem:[%s1] sm:$0xff]
    %v17 = vld [vmem:[%s1 + $0x8] sm:$0xff]
    %v18 = vld [vmem:[%s1 + $0x10] sm:$0xff]
    %v19 = vld [vmem:[%s1 + $0x18] sm:$0xff]
    %21 = vset.pattern.permute.xlu0 0
    %22 = vperm.xlu0 %21, %v16
    %v23 = vpop.permute.xlu0 %22
    %26 = vset.pattern.permute.xlu0 0
    %27 = vperm.xlu0 %26, %v17
    %v28 = vpop.permute.xlu0 %27
    %31 = vset.pattern.permute.xlu0 0
    %32 = vperm.xlu0 %31, %v18
    %v33 = vpop.permute.xlu0 %32
    %36 = vset.pattern.permute.xlu0 0
    %37 = vperm.xlu0 %36, %v19
    %v38 = vpop.permute.xlu0 %37
    %v40 = vlaneseq
    %v41 = vshrl.u32 %v40, 7
    %v42 = vsub.s32 0, %v41
    %v43 = vrot.slane %v15, %v42
    %v44 = vmul.f32 %v23, %v43
    %v45 = vmul.f32 %v28, %v43
    %v46 = vmul.f32 %v33, %v43
    %v47 = vmul.f32 %v38, %v43
    %48 = vset.pattern.permute.xlu0 1
    %49 = vperm.xlu0 %48, %v16
    %v50 = vpop.permute.xlu0 %49
    %52 = vset.pattern.permute.xlu0 1
    %53 = vperm.xlu0 %52, %v17
    %v54 = vpop.permute.xlu0 %53
    %56 = vset.pattern.permute.xlu0 1
    %57 = vperm.xlu0 %56, %v18
    %v58 = vpop.permute.xlu0 %57
    %60 = vset.pattern.permute.xlu0 1
    %61 = vperm.xlu0 %60, %v19
    %v62 = vpop.permute.xlu0 %61
    %v64 = vlaneseq
    %v65 = vshrl.u32 %v64, 7
    %v66 = vsub.s32 1, %v65
    %v67 = vrot.slane %v15, %v66
    %v68 = vmul.f32 %v50, %v67
    %v69 = vmul.f32 %v54, %v67
    %v70 = vmul.f32 %v58, %v67
    %v71 = vmul.f32 %v62, %v67
    %v72 = vadd.f32 %v44, %v68
    %v73 = vadd.f32 %v45, %v69
    %v74 = vadd.f32 %v46, %v70
    %v75 = vadd.f32 %v47, %v71
    %v76 = vld [vmem:[%s2] sm:$0xff]
    %v77 = vld [vmem:[%s2 + $0x8] sm:$0xff]
    %v78 = vld [vmem:[%s2 + $0x10] sm:$0xff]
    %v79 = vld [vmem:[%s2 + $0x18] sm:$0xff]
    %81 = vset.pattern.permute.xlu0 0
    %82 = vperm.xlu0 %81, %v76
    %v83 = vpop.permute.xlu0 %82
    %86 = vset.pattern.permute.xlu0 0
    %87 = vperm.xlu0 %86, %v77
    %v88 = vpop.permute.xlu0 %87
    %91 = vset.pattern.permute.xlu0 0
    %92 = vperm.xlu0 %91, %v78
    %v93 = vpop.permute.xlu0 %92
    %96 = vset.pattern.permute.xlu0 0
    %97 = vperm.xlu0 %96, %v79
    %v98 = vpop.permute.xlu0 %97
    %v100 = vadd.f32 %v72, %v83
    %v101 = vadd.f32 %v73, %v88
    %v102 = vadd.f32 %v74, %v93
    %v103 = vadd.f32 %v75, %v98
    %v104 = vmax.f32 %v100, 0.0
    %v105 = vmax.f32 %v101, 0.0
    %v106 = vmax.f32 %v102, 0.0
    %v107 = vmax.f32 %v103, 0.0
    %s108 = scalar_lea.vmem %s1, 32
    %v109 = vld [vmem:[%s108] sm:$0xff]
    %v110 = vld [vmem:[%s108 + $0x8] sm:$0xff]
    %v111 = vld [vmem:[%s108 + $0x10] sm:$0xff]
    %v112 = vld [vmem:[%s108 + $0x18] sm:$0xff]
    %s113 = scalar_lea.vmem %s2, 32
    %v114 = vld [vmem:[%s113] sm:$0xff]
    %v115 = vld [vmem:[%s113 + $0x8] sm:$0xff]
    %v116 = vld [vmem:[%s113 + $0x10] sm:$0xff]
    %v117 = vld [vmem:[%s113 + $0x18] sm:$0xff]
    %119 = vset.pattern.permute.xlu0 0
    %120 = vperm.xlu0 %119, %v114
    %v121 = vpop.permute.xlu0 %120
    %124 = vset.pattern.permute.xlu0 0
    %125 = vperm.xlu0 %124, %v115
    %v126 = vpop.permute.xlu0 %125
    %129 = vset.pattern.permute.xlu0 0
    %130 = vperm.xlu0 %129, %v116
    %v131 = vpop.permute.xlu0 %130
    %134 = vset.pattern.permute.xlu0 0
    %135 = vperm.xlu0 %134, %v117
    %v136 = vpop.permute.xlu0 %135
    %vm138 = vcmask 261120
    %v140 = vsel %vm138, %v109, 0
    %v143 = vsel %vm138, %v110, 0
    %v146 = vsel %vm138, %v111, 0
    %v149 = vsel %vm138, %v112, 0
    %151 = vmatprep.subr.mxu0 0.0
    %152 = vmatpush1.msra.mxu0 0.0
    %153 = vmatprep.subr.mxu0 0.0
    %154 = vmatpush1.msra.mxu0 0.0
    %155 = vmatprep.subr.mxu0 0.0
    %156 = vmatpush1.msra.mxu0 0.0
    %157 = vmatprep.subr.mxu0 0.0
    %158 = vmatpush1.msra.mxu0 0.0
    %159 = vmatprep.subr.mxu0 0.0
    %160 = vmatpush1.msra.mxu0 0.0
    %161 = vmatprep.subr.mxu0 0.0
    %162 = vmatpush1.msra.mxu0 0.0
    %163 = vmatprep.subr.mxu0 0.0
    %164 = vmatpush1.msra.mxu0 0.0
    %165 = vmatprep.subr.mxu0 0.0
    %166 = vmatpush1.msra.mxu0 0.0
    %167 = vmatprep.subr.mxu0 0.0
    %168 = vmatpush1.msra.mxu0 0.0
    %169 = vmatprep.subr.mxu0 0.0
    %170 = vmatpush1.msra.mxu0 0.0
    %171 = vmatprep.subr.mxu0 0.0
    %172 = vmatpush1.msra.mxu0 0.0
    %173 = vmatprep.subr.mxu0 0.0
    %174 = vmatpush1.msra.mxu0 0.0
    %175 = vmatprep.subr.mxu0 0.0
    %176 = vmatpush1.msra.mxu0 %v107
    %177 = vmatprep.subr.mxu0 0.0
    %178 = vmatpush1.msra.mxu0 %v106
    %179 = vmatprep.subr.mxu0 0.0
    %180 = vmatpush1.msra.mxu0 %v105
    %181 = vmatprep.subr.mxu0 0.0
    %182 = vmatpush1.msra.mxu0 %v104
    %183 = vmatprep.subr.mxu0 0.0
    %184 = vmatpush2.msra.mxu0 0.0
    %185 = vmatprep.subr.mxu0 0.0
    %186 = vmatpush2.msra.mxu0 0.0
    %187 = vmatprep.subr.mxu0 0.0
    %188 = vmatpush2.msra.mxu0 0.0
    %189 = vmatprep.subr.mxu0 0.0
    %190 = vmatpush2.msra.mxu0 0.0
    %191 = vmatprep.subr.mxu0 0.0
    %192 = vmatpush2.msra.mxu0 0.0
    %193 = vmatprep.subr.mxu0 0.0
    %194 = vmatpush2.msra.mxu0 0.0
    %195 = vmatprep.subr.mxu0 0.0
    %196 = vmatpush2.msra.mxu0 0.0
    %197 = vmatprep.subr.mxu0 0.0
    %198 = vmatpush2.msra.mxu0 0.0
    %199 = vmatprep.subr.mxu0 0.0
    %200 = vmatpush2.msra.mxu0 0.0
    %201 = vmatprep.subr.mxu0 0.0
    %202 = vmatpush2.msra.mxu0 0.0
    %203 = vmatprep.subr.mxu0 0.0
    %204 = vmatpush2.msra.mxu0 0.0
    %205 = vmatprep.subr.mxu0 0.0
    %206 = vmatpush2.msra.mxu0 0.0
    %207 = vmatprep.subr.mxu0 0.0
    %208 = vmatpush2.msra.mxu0 0.0
    %209 = vmatprep.subr.mxu0 0.0
    %210 = vmatpush2.msra.mxu0 0.0
    %211 = vmatprep.subr.mxu0 0.0
    %212 = vmatpush2.msra.mxu0 0.0
    %213 = vmatprep.subr.mxu0 0.0
    %214 = vmatpush2.msra.mxu0 0.0
    %215 = vmatprep.mubr.f32.mxu0 0.0
    %216 = vmatmul.mubr.f32.gmra.mxu0 %v140
    %v217 = vpop.f32.mrf.mxu0
    %v218 = vadd.f32 %v121, %v217
    %v219 = vpop.f32.mrf.mxu0
    %220 = vmatprep.mubr.f32.mxu0 0.0
    %221 = vmatmul.mubr.f32.gmra.mxu0 %v143
    %v222 = vpop.f32.mrf.mxu0
    %v223 = vadd.f32 %v126, %v222
    %v224 = vpop.f32.mrf.mxu0
    %225 = vmatprep.mubr.f32.mxu0 0.0
    %226 = vmatmul.mubr.f32.gmra.mxu0 %v146
    %v227 = vpop.f32.mrf.mxu0
    %v228 = vadd.f32 %v131, %v227
    %v229 = vpop.f32.mrf.mxu0
    %230 = vmatprep.mubr.f32.mxu0 0.0
    %231 = vmatmul.mubr.f32.gmra.mxu0 %v149
    %v232 = vpop.f32.mrf.mxu0
    %v233 = vadd.f32 %v136, %v232
    %v234 = vpop.f32.mrf.mxu0
    %235 = vdwg.mxu0
    %v236 = vmax.f32 %v218, 0.0
    %v237 = vmax.f32 %v223, 0.0
    %v238 = vmax.f32 %v228, 0.0
    %v239 = vmax.f32 %v233, 0.0
    %s240 = scalar_lea.vmem %s1, 64
    %v241 = vld [vmem:[%s240] sm:$0xff]
    %v242 = vld [vmem:[%s240 + $0x8] sm:$0xff]
    %v243 = vld [vmem:[%s240 + $0x10] sm:$0xff]
    %v244 = vld [vmem:[%s240 + $0x18] sm:$0xff]
    %s245 = scalar_lea.vmem %s2, 64
    %v246 = vld [vmem:[%s245] sm:$0xff]
    %v247 = vld [vmem:[%s245 + $0x8] sm:$0xff]
    %v248 = vld [vmem:[%s245 + $0x10] sm:$0xff]
    %v249 = vld [vmem:[%s245 + $0x18] sm:$0xff]
    %251 = vset.pattern.permute.xlu0 0
    %252 = vperm.xlu0 %251, %v246
    %v253 = vpop.permute.xlu0 %252
    %256 = vset.pattern.permute.xlu0 0
    %257 = vperm.xlu0 %256, %v247
    %v258 = vpop.permute.xlu0 %257
    %261 = vset.pattern.permute.xlu0 0
    %262 = vperm.xlu0 %261, %v248
    %v263 = vpop.permute.xlu0 %262
    %266 = vset.pattern.permute.xlu0 0
    %267 = vperm.xlu0 %266, %v249
    %v268 = vpop.permute.xlu0 %267
    %v271 = vsel %vm138, %v241, 0
    %v274 = vsel %vm138, %v242, 0
    %v277 = vsel %vm138, %v243, 0
    %v280 = vsel %vm138, %v244, 0
    %282 = vmatprep.subr.mxu0 0.0
    %283 = vmatpush1.msra.mxu0 0.0
    %284 = vmatprep.subr.mxu0 0.0
    %285 = vmatpush1.msra.mxu0 0.0
    %286 = vmatprep.subr.mxu0 0.0
    %287 = vmatpush1.msra.mxu0 0.0
    %288 = vmatprep.subr.mxu0 0.0
    %289 = vmatpush1.msra.mxu0 0.0
    %290 = vmatprep.subr.mxu0 0.0
    %291 = vmatpush1.msra.mxu0 0.0
    %292 = vmatprep.subr.mxu0 0.0
    %293 = vmatpush1.msra.mxu0 0.0
    %294 = vmatprep.subr.mxu0 0.0
    %295 = vmatpush1.msra.mxu0 0.0
    %296 = vmatprep.subr.mxu0 0.0
    %297 = vmatpush1.msra.mxu0 0.0
    %298 = vmatprep.subr.mxu0 0.0
    %299 = vmatpush1.msra.mxu0 0.0
    %300 = vmatprep.subr.mxu0 0.0
    %301 = vmatpush1.msra.mxu0 0.0
    %302 = vmatprep.subr.mxu0 0.0
    %303 = vmatpush1.msra.mxu0 0.0
    %304 = vmatprep.subr.mxu0 0.0
    %305 = vmatpush1.msra.mxu0 0.0
    %306 = vmatprep.subr.mxu0 0.0
    %307 = vmatpush1.msra.mxu0 %v239
    %308 = vmatprep.subr.mxu0 0.0
    %309 = vmatpush1.msra.mxu0 %v238
    %310 = vmatprep.subr.mxu0 0.0
    %311 = vmatpush1.msra.mxu0 %v237
    %312 = vmatprep.subr.mxu0 0.0
    %313 = vmatpush1.msra.mxu0 %v236
    %314 = vmatprep.subr.mxu0 0.0
    %315 = vmatpush2.msra.mxu0 0.0
    %316 = vmatprep.subr.mxu0 0.0
    %317 = vmatpush2.msra.mxu0 0.0
    %318 = vmatprep.subr.mxu0 0.0
    %319 = vmatpush2.msra.mxu0 0.0
    %320 = vmatprep.subr.mxu0 0.0
    %321 = vmatpush2.msra.mxu0 0.0
    %322 = vmatprep.subr.mxu0 0.0
    %323 = vmatpush2.msra.mxu0 0.0
    %324 = vmatprep.subr.mxu0 0.0
    %325 = vmatpush2.msra.mxu0 0.0
    %326 = vmatprep.subr.mxu0 0.0
    %327 = vmatpush2.msra.mxu0 0.0
    %328 = vmatprep.subr.mxu0 0.0
    %329 = vmatpush2.msra.mxu0 0.0
    %330 = vmatprep.subr.mxu0 0.0
    %331 = vmatpush2.msra.mxu0 0.0
    %332 = vmatprep.subr.mxu0 0.0
    %333 = vmatpush2.msra.mxu0 0.0
    %334 = vmatprep.subr.mxu0 0.0
    %335 = vmatpush2.msra.mxu0 0.0
    %336 = vmatprep.subr.mxu0 0.0
    %337 = vmatpush2.msra.mxu0 0.0
    %338 = vmatprep.subr.mxu0 0.0
    %339 = vmatpush2.msra.mxu0 0.0
    %340 = vmatprep.subr.mxu0 0.0
    %341 = vmatpush2.msra.mxu0 0.0
    %342 = vmatprep.subr.mxu0 0.0
    %343 = vmatpush2.msra.mxu0 0.0
    %344 = vmatprep.subr.mxu0 0.0
    %345 = vmatpush2.msra.mxu0 0.0
    %346 = vmatprep.mubr.f32.mxu0 0.0
    %347 = vmatmul.mubr.f32.gmra.mxu0 %v271
    %v348 = vpop.f32.mrf.mxu0
    %v349 = vadd.f32 %v253, %v348
    %v350 = vpop.f32.mrf.mxu0
    %351 = vmatprep.mubr.f32.mxu0 0.0
    %352 = vmatmul.mubr.f32.gmra.mxu0 %v274
    %v353 = vpop.f32.mrf.mxu0
    %v354 = vadd.f32 %v258, %v353
    %v355 = vpop.f32.mrf.mxu0
    %356 = vmatprep.mubr.f32.mxu0 0.0
    %357 = vmatmul.mubr.f32.gmra.mxu0 %v277
    %v358 = vpop.f32.mrf.mxu0
    %v359 = vadd.f32 %v263, %v358
    %v360 = vpop.f32.mrf.mxu0
    %361 = vmatprep.mubr.f32.mxu0 0.0
    %362 = vmatmul.mubr.f32.gmra.mxu0 %v280
    %v363 = vpop.f32.mrf.mxu0
    %v364 = vadd.f32 %v268, %v363
    %v365 = vpop.f32.mrf.mxu0
    %366 = vdwg.mxu0
    %v367 = vmax.f32 %v349, 0.0
    %v368 = vmax.f32 %v354, 0.0
    %v369 = vmax.f32 %v359, 0.0
    %v370 = vmax.f32 %v364, 0.0
    %s371 = scalar_lea.vmem %s1, 96
    %v372 = vld [vmem:[%s371] sm:$0xff]
    %s373 = scalar_lea.vmem %s2, 96
    %v374 = vld [vmem:[%s373] sm:$0xff]
    %376 = vset.pattern.permute.xlu0 0
    %377 = vperm.xlu0 %376, %v374
    %v378 = vpop.permute.xlu0 %377
    %v381 = vsel %vm138, %v372, 0
    %383 = vmatprep.subr.mxu0 0.0
    %384 = vmatpush1.msra.mxu0 0.0
    %385 = vmatprep.subr.mxu0 0.0
    %386 = vmatpush1.msra.mxu0 0.0
    %387 = vmatprep.subr.mxu0 0.0
    %388 = vmatpush1.msra.mxu0 0.0
    %389 = vmatprep.subr.mxu0 0.0
    %390 = vmatpush1.msra.mxu0 0.0
    %391 = vmatprep.subr.mxu0 0.0
    %392 = vmatpush1.msra.mxu0 0.0
    %393 = vmatprep.subr.mxu0 0.0
    %394 = vmatpush1.msra.mxu0 0.0
    %395 = vmatprep.subr.mxu0 0.0
    %396 = vmatpush1.msra.mxu0 0.0
    %397 = vmatprep.subr.mxu0 0.0
    %398 = vmatpush1.msra.mxu0 0.0
    %399 = vmatprep.subr.mxu0 0.0
    %400 = vmatpush1.msra.mxu0 0.0
    %401 = vmatprep.subr.mxu0 0.0
    %402 = vmatpush1.msra.mxu0 0.0
    %403 = vmatprep.subr.mxu0 0.0
    %404 = vmatpush1.msra.mxu0 0.0
    %405 = vmatprep.subr.mxu0 0.0
    %406 = vmatpush1.msra.mxu0 0.0
    %407 = vmatprep.subr.mxu0 0.0
    %408 = vmatpush1.msra.mxu0 %v370
    %409 = vmatprep.subr.mxu0 0.0
    %410 = vmatpush1.msra.mxu0 %v369
    %411 = vmatprep.subr.mxu0 0.0
    %412 = vmatpush1.msra.mxu0 %v368
    %413 = vmatprep.subr.mxu0 0.0
    %414 = vmatpush1.msra.mxu0 %v367
    %415 = vmatprep.subr.mxu0 0.0
    %416 = vmatpush2.msra.mxu0 0.0
    %417 = vmatprep.subr.mxu0 0.0
    %418 = vmatpush2.msra.mxu0 0.0
    %419 = vmatprep.subr.mxu0 0.0
    %420 = vmatpush2.msra.mxu0 0.0
    %421 = vmatprep.subr.mxu0 0.0
    %422 = vmatpush2.msra.mxu0 0.0
    %423 = vmatprep.subr.mxu0 0.0
    %424 = vmatpush2.msra.mxu0 0.0
    %425 = vmatprep.subr.mxu0 0.0
    %426 = vmatpush2.msra.mxu0 0.0
    %427 = vmatprep.subr.mxu0 0.0
    %428 = vmatpush2.msra.mxu0 0.0
    %429 = vmatprep.subr.mxu0 0.0
    %430 = vmatpush2.msra.mxu0 0.0
    %431 = vmatprep.subr.mxu0 0.0
    %432 = vmatpush2.msra.mxu0 0.0
    %433 = vmatprep.subr.mxu0 0.0
    %434 = vmatpush2.msra.mxu0 0.0
    %435 = vmatprep.subr.mxu0 0.0
    %436 = vmatpush2.msra.mxu0 0.0
    %437 = vmatprep.subr.mxu0 0.0
    %438 = vmatpush2.msra.mxu0 0.0
    %439 = vmatprep.subr.mxu0 0.0
    %440 = vmatpush2.msra.mxu0 0.0
    %441 = vmatprep.subr.mxu0 0.0
    %442 = vmatpush2.msra.mxu0 0.0
    %443 = vmatprep.subr.mxu0 0.0
    %444 = vmatpush2.msra.mxu0 0.0
    %445 = vmatprep.subr.mxu0 0.0
    %446 = vmatpush2.msra.mxu0 0.0
    %447 = vmatprep.mubr.f32.mxu0 0.0
    %448 = vmatmul.mubr.f32.gmra.mxu0 %v381
    %v449 = vpop.f32.mrf.mxu0
    %v450 = vadd.f32 %v378, %v449
    %v451 = vpop.f32.mrf.mxu0
    %452 = vdwg.mxu0
    %453 = vst [vmem:[#allocation2] sm:$0x1] %v450
    // Predicated region
    $region14: #{tpu_custom_call.1} parent=1 // pred_check
      _
    $region15: #{tpu_custom_call.1} parent=1 // pred_check_branch
      %455 = sbr.rel (0) target = $region17
    $region16: #{tpu_custom_call.1} parent=1 // pred_region
      %s457 = ssub.s32 16, 16
      %458 = vsyncadd [#allocation3], %s457
      %s460 = sshll.u32 [#allocation2], 4
      %s461 = int_to_ptr.vmem [resolvable:$true] %s460
      %463 = dma.vmem_to_hbm [thread:$0]  %s461, 16, %s3, [#allocation3]
    $region17: #{tpu_custom_call.1} parent=1 // pred_fallthru
      _
    // Predicated region
    $region18: #{tpu_custom_call.1} parent=1 // pred_check
      _
    $region19: #{tpu_custom_call.1} parent=1 // pred_check_branch
      %465 = sbr.rel (0) target = $region21
    $region20: #{tpu_custom_call.1} parent=1 // pred_region
      %466 = dma.done [#allocation3], 16
    $region21: #{tpu_custom_call.1} parent=1 // pred_fallthru
      _
    %467 = vsyncpa [#allocation3], 1

</llo_original>
